<compile_context>
chip_gen: v7x
topology: tpu7x:2x2x1
jax: 0.10.0
libtpu: 0.0.40
codegen_flags: <defaults>
</compile_context>

<pallas_src>
import functools

import jax
import jax.numpy as jnp
from jax.experimental import pallas as pl
from jax.experimental.pallas import tpu as pltpu


LANE = 128
NUM_CORES = 2                        # leading "parallel" grid axis (v7x: 2 TCs)
TARGET_BLOCK_ELEMS = 1024 * 1024     # ~4 MiB (f32) per input tile per grid step
VMEM_LIMIT_BYTES = 48 * 1024 * 1024  # safe on v5e/v6e (128 MiB) and v7x (64 MiB)


def _l1_sum_kernel(x_ref, y_ref, out_ref, acc_ref, *, total_rows, needs_mask):
    """Per-core partial sum of |x - y| over this core's range of row blocks."""
    core = pl.program_id(0)
    step = pl.program_id(1)
    block_rows, w = x_ref.shape
    blk = core * pl.num_programs(1) + step      # global (unclamped) block index
    row0 = blk * block_rows

    @pl.when(step == 0)
    def _():
        acc_ref[...] = jnp.zeros_like(acc_ref)

    a = jnp.abs(x_ref[...].astype(jnp.float32) - y_ref[...].astype(jnp.float32))

    def accumulate(vals):
        if block_rows % 8 == 0:
            # Fold the tile onto the (8, w) accumulator: pure VPU vreg adds,
            # no per-step cross-lane/sublane XLU reduce.
            acc_ref[...] += vals.reshape(block_rows // 8, 8, w).sum(axis=0)
        else:
            # Tiny input: accumulator has exactly block_rows rows.
            acc_ref[...] += vals

    if needs_mask:
        full = row0 + block_rows <= total_rows

        @pl.when(full)
        def _():
            # Hot path: unmasked accumulate (runs on all interior blocks).
            accumulate(a)

        @pl.when(jnp.logical_not(full))
        def _():
            # Ragged last block, or duplicated block from the 2-core
            # over-coverage: zero rows past the true row count.
            rid = jax.lax.broadcasted_iota(jnp.int32, (block_rows, 1), 0) + row0
            accumulate(jnp.where(rid < total_rows, a, 0.0))
    else:
        accumulate(a)

    @pl.when(step == pl.num_programs(1) - 1)
    def _():
        # Single cross-lane/sublane reduction per core, once per pass.
        out_ref[...] = jnp.sum(acc_ref[...]).reshape(1, 1, 1)


def l1_loss(inp: jax.Array, target: jax.Array) -> jax.Array:
    """F.l1_loss(input, target) with the default 'mean' reduction."""
    assert inp.shape == target.shape, "shapes must match"
    n_elem = inp.size

    x = inp.reshape(-1)
    y = target.reshape(-1)

    # Largest 128-aligned prefix goes through the kernel; the (<128-element)
    # tail is summed wrapper-side instead of padding full copies of the inputs.
    n_main = (n_elem // LANE) * LANE
    if n_main < n_elem:
        tail = jnp.sum(jnp.abs(x[n_main:].astype(jnp.float32)
                               - y[n_main:].astype(jnp.float32)))
    else:
        tail = None

    if n_main == 0:
        # Entire input is smaller than one lane row: pure-JAX fallback.
        return (tail / jnp.float32(n_elem)).astype(jnp.float32)

    # Largest lane-dense width dividing the aligned prefix (free layout view).
    for w in (1024, 512, 256, 128):
        if n_main % w == 0:
            break
    rows = n_main // w
    x2 = x[:n_main].reshape(rows, w)
    y2 = y[:n_main].reshape(rows, w)

    # Rows per grid step: multiple of the dtype sublane-packing factor
    # (8 for 32-bit, 16 for bf16, 32 for 8-bit), targeting ~TARGET_BLOCK_ELEMS
    # elements per tile.
    packing = max(1, 4 // max(1, inp.dtype.itemsize))
    row_align = 8 * packing
    if rows >= row_align:
        max_block_rows = max(
            row_align, (TARGET_BLOCK_ELEMS // w) // row_align * row_align)
        block_rows = min(max_block_rows, (rows // row_align) * row_align)
    else:
        block_rows = rows            # tiny input: one partial block

    total_blocks = pl.cdiv(rows, block_rows)
    steps_per_core = pl.cdiv(total_blocks, NUM_CORES)
    grid = (NUM_CORES, steps_per_core)
    # Masking needed iff the last block is ragged or the 2-core split
    # over-covers the block range (odd number of blocks).
    needs_mask = (rows % block_rows != 0) or (
        NUM_CORES * steps_per_core != total_blocks)

    # Accumulator: (8, w) for the fold path, (block_rows, w) for tiny inputs.
    acc_rows = 8 if block_rows % 8 == 0 else block_rows

    def in_index_map(c, j):
        # Clamp over-coverage onto the last valid block (fully masked in-kernel).
        return (jnp.minimum(c * steps_per_core + j, total_blocks - 1), 0)

    kernel = functools.partial(
        _l1_sum_kernel, total_rows=rows, needs_mask=needs_mask)

    partials = pl.pallas_call(
        kernel,
        out_shape=jax.ShapeDtypeStruct((NUM_CORES, 1, 1), jnp.float32),
        grid_spec=pltpu.PrefetchScalarGridSpec(
            num_scalar_prefetch=0,
            grid=grid,
            in_specs=[
                pl.BlockSpec((block_rows, w), in_index_map),
                pl.BlockSpec((block_rows, w), in_index_map),
            ],
            out_specs=pl.BlockSpec((1, 1, 1), lambda c, j: (c, 0, 0)),
            scratch_shapes=[pltpu.VMEM((acc_rows, w), jnp.float32)],
        ),
        compiler_params=pltpu.CompilerParams(
            dimension_semantics=("parallel", "arbitrary"),
            vmem_limit_bytes=VMEM_LIMIT_BYTES,
        ),
    )(x2, y2)

    total = jnp.sum(partials)
    if tail is not None:
        total = total + tail

    # 'mean' reduction over the ORIGINAL element count.
    return (total / jnp.float32(n_elem)).astype(jnp.float32)


if __name__ == "__main__":
    key = jax.random.PRNGKey(0)
    k1, k2 = jax.random.split(key)

    # Small HDR-like inputs: batch=2, channels=4, spatial=16x16 (NCHW).
    shape = (2, 4, 16, 16)
    inp = jax.random.normal(k1, shape, dtype=jnp.float32)
    tgt = jax.random.normal(k2, shape, dtype=jnp.float32)

    loss = l1_loss(inp, tgt)
    jax.block_until_ready(loss)

    # Reference check against plain JAX.
    ref = jnp.mean(jnp.abs(inp - tgt))
    assert jnp.allclose(loss, ref, rtol=1e-5, atol=1e-6), (loss, ref)

    print("KERNEL_OK")
</pallas_src>

<mosaic_0001>
module attributes {stable_mosaic.version = 11 : i64} {
  func.func @_l1_sum_kernel(%arg0: i32, %arg1: i32, %arg2: memref<2x1024xf32, #tpu.memory_space<vmem>>, %arg3: memref<2x1024xf32, #tpu.memory_space<vmem>>, %arg4: memref<1x1x1xf32, #tpu.memory_space<vmem>>, %arg5: memref<2x1024xf32, #tpu.memory_space<vmem>>) attributes {dimension_semantics = [#tpu.dimension_semantics<parallel>, #tpu.dimension_semantics<arbitrary>], iteration_bounds = array<i64: 2, 1>, scalar_prefetch = 0 : i64, scratch_operands = 1 : i64, tpu.core_type = #tpu.core_type<tc>, window_params = [{transform_indices = @transform_0, window_bounds = array<i64: 2, 1024>}, {transform_indices = @transform_1, window_bounds = array<i64: 2, 1024>}, {transform_indices = @transform_2, window_bounds = array<i64: 1, 1, 1>}]} {
    %c1_i32 = arith.constant 1 : i32
    %0 = arith.muli %arg0, %c1_i32 : i32
    %1 = arith.addi %0, %arg1 : i32
    %c2_i32 = arith.constant 2 : i32
    %2 = arith.muli %1, %c2_i32 : i32
    %c0_i32 = arith.constant 0 : i32
    %3 = arith.cmpi eq, %arg1, %c0_i32 : i32
    %4 = arith.extui %3 : i1 to i32
    %c0_i32_0 = arith.constant 0 : i32
    %5 = arith.cmpi ne, %4, %c0_i32_0 : i32
    scf.if %5 {
      %cst = arith.constant 0.000000e+00 : f32
      %20 = vector.broadcast %cst : f32 to vector<2x1024xf32>
      %c0_10 = arith.constant 0 : index
      %c0_11 = arith.constant 0 : index
      %21 = vector.load %arg5[%c0_10, %c0_11] : memref<2x1024xf32, #tpu.memory_space<vmem>>, vector<2x1024xf32>
      tpu.vector_store %arg5[%c0_10, %c0_11], %20 {strides = array<i32>} : memref<2x1024xf32, #tpu.memory_space<vmem>>, vector<2x1024xf32>,
    } else {
    }
    %c0 = arith.constant 0 : index
    %c0_1 = arith.constant 0 : index
    %6 = vector.load %arg2[%c0, %c0_1] : memref<2x1024xf32, #tpu.memory_space<vmem>>, vector<2x1024xf32>
    %c0_2 = arith.constant 0 : index
    %c0_3 = arith.constant 0 : index
    %7 = vector.load %arg3[%c0_2, %c0_3] : memref<2x1024xf32, #tpu.memory_space<vmem>>, vector<2x1024xf32>
    %8 = arith.subf %6, %7 : vector<2x1024xf32>
    %9 = math.absf %8 : vector<2x1024xf32>
    %c2_i32_4 = arith.constant 2 : i32
    %10 = arith.addi %2, %c2_i32_4 : i32
    %c2_i32_5 = arith.constant 2 : i32
    %11 = arith.cmpi sle, %10, %c2_i32_5 : i32
    %12 = arith.extui %11 : i1 to i32
    %c0_i32_6 = arith.constant 0 : i32
    %13 = arith.cmpi ne, %12, %c0_i32_6 : i32
    scf.if %13 {
      %c0_10 = arith.constant 0 : index
      %c0_11 = arith.constant 0 : index
      %20 = vector.load %arg5[%c0_10, %c0_11] : memref<2x1024xf32, #tpu.memory_space<vmem>>, vector<2x1024xf32>
      %21 = arith.addf %20, %9 : vector<2x1024xf32>
      %c0_12 = arith.constant 0 : index
      %c0_13 = arith.constant 0 : index
      %22 = vector.load %arg5[%c0_12, %c0_13] : memref<2x1024xf32, #tpu.memory_space<vmem>>, vector<2x1024xf32>
      tpu.vector_store %arg5[%c0_12, %c0_13], %21 {strides = array<i32>} : memref<2x1024xf32, #tpu.memory_space<vmem>>, vector<2x1024xf32>,
    } else {
    }
    %true = arith.constant true
    %14 = arith.xori %11, %true : i1
    %15 = arith.extui %14 : i1 to i32
    %c0_i32_7 = arith.constant 0 : i32
    %16 = arith.cmpi ne, %15, %c0_i32_7 : i32
    scf.if %16 {
      %20 = tpu.iota {dimensions = array<i32: 0>} : vector<2x1xi32>
      %21 = vector.broadcast %2 : i32 to vector<2x1xi32>
      %22 = arith.addi %20, %21 : vector<2x1xi32>
      %c2_i32_10 = arith.constant 2 : i32
      %23 = vector.broadcast %c2_i32_10 : i32 to vector<2x1xi32>
      %24 = arith.cmpi slt, %22, %23 : vector<2x1xi32>
      %cst = arith.constant 0.000000e+00 : f32
      %25 = vector.shape_cast %24 : vector<2x1xi1> to vector<2x1xi1>
      %26 = vector.broadcast %25 : vector<2x1xi1> to vector<2x1024xi1>
      %27 = vector.broadcast %cst : f32 to vector<2x1024xf32>
      %28 = arith.select %26, %9, %27 : vector<2x1024xi1>, vector<2x1024xf32>
      %c0_11 = arith.constant 0 : index
      %c0_12 = arith.constant 0 : index
      %29 = vector.load %arg5[%c0_11, %c0_12] : memref<2x1024xf32, #tpu.memory_space<vmem>>, vector<2x1024xf32>
      %30 = arith.addf %29, %28 : vector<2x1024xf32>
      %c0_13 = arith.constant 0 : index
      %c0_14 = arith.constant 0 : index
      %31 = vector.load %arg5[%c0_13, %c0_14] : memref<2x1024xf32, #tpu.memory_space<vmem>>, vector<2x1024xf32>
      tpu.vector_store %arg5[%c0_13, %c0_14], %30 {strides = array<i32>} : memref<2x1024xf32, #tpu.memory_space<vmem>>, vector<2x1024xf32>,
    } else {
    }
    %c0_i32_8 = arith.constant 0 : i32
    %17 = arith.cmpi eq, %arg1, %c0_i32_8 : i32
    %18 = arith.extui %17 : i1 to i32
    %c0_i32_9 = arith.constant 0 : i32
    %19 = arith.cmpi ne, %18, %c0_i32_9 : i32
    scf.if %19 {
      %c0_10 = arith.constant 0 : index
      %c0_11 = arith.constant 0 : index
      %20 = vector.load %arg5[%c0_10, %c0_11] : memref<2x1024xf32, #tpu.memory_space<vmem>>, vector<2x1024xf32>
      %21 = vector.shape_cast %20 : vector<2x1024xf32> to vector<1x2x1024xf32>
      %cst = arith.constant dense<0.000000e+00> : vector<1xf32>
      %22 = vector.multi_reduction <add>, %21, %cst [1, 2] : vector<1x2x1024xf32> to vector<1xf32>
      %23 = vector.shape_cast %22 : vector<1xf32> to vector<1x1x1xf32>
      %24 = vector.extract %23[0, 0, 0] : f32 from vector<1x1x1xf32>
      %25 = vector.broadcast %24 : f32 to vector<1x1x1xf32>
      %c0_12 = arith.constant 0 : index
      %c0_13 = arith.constant 0 : index
      %c0_14 = arith.constant 0 : index
      %26 = vector.load %arg4[%c0_12, %c0_13, %c0_14] : memref<1x1x1xf32, #tpu.memory_space<vmem>>, vector<1x1x1xf32>
      tpu.vector_store %arg4[%c0_12, %c0_13, %c0_14], %25 {strides = array<i32>} : memref<1x1x1xf32, #tpu.memory_space<vmem>>, vector<1x1x1xf32>,
    } else {
    }
    return
  }
  func.func @transform_0(%arg0: i32, %arg1: i32) -> (i32, i32) {
    %c1_i32 = arith.constant 1 : i32
    %0 = arith.muli %arg0, %c1_i32 : i32
    %1 = arith.addi %0, %arg1 : i32
    %c0_i32 = arith.constant 0 : i32
    %2 = arith.minsi %1, %c0_i32 : i32
    %c0_i32_0 = arith.constant 0 : i32
    %c0_i32_1 = arith.constant 0 : i32
    return %2, %c0_i32_0 : i32, i32
  }
  func.func @transform_1(%arg0: i32, %arg1: i32) -> (i32, i32) {
    %c1_i32 = arith.constant 1 : i32
    %0 = arith.muli %arg0, %c1_i32 : i32
    %1 = arith.addi %0, %arg1 : i32
    %c0_i32 = arith.constant 0 : i32
    %2 = arith.minsi %1, %c0_i32 : i32
    %c0_i32_0 = arith.constant 0 : i32
    %c0_i32_1 = arith.constant 0 : i32
    return %2, %c0_i32_0 : i32, i32
  }
  func.func @transform_2(%arg0: i32, %arg1: i32) -> (i32, i32, i32) {
    %c0_i32 = arith.constant 0 : i32
    %c0_i32_0 = arith.constant 0 : i32
    %c0_i32_1 = arith.constant 0 : i32
    return %arg0, %c0_i32, %c0_i32_0 : i32, i32, i32
  }
}

</mosaic_0001>

<llo_original>
// kernel: tpu_custom_call.1
$region0: #{tpu_custom_call.1}
  #allocation0 [shape = 'u32[]', space=smem, size = 0x4, offset = 0x4, fixed_abs, tag = 'smem constant byte address 0x4 - core index']
  #allocation1 [shape = 'u32[144,128]{1,0:T(1,128)}', space=vmem, size = 0x12000, scoped, tag = 'internal scratch']
  #allocation2 [shape = 'f32[2,1024]{1,0:T(2,128)}', space=vmem, size = 0x2000, scoped, tag = 'scratch operand']
  %s0 = inlined_call_operand.hbm [shape: f32[2,1024], index: 0, kind: input, shape index: {}]
  %s1 = inlined_call_operand.hbm [shape: f32[2,1024], index: 1, kind: input, shape index: {}]
  %s2 = inlined_call_operand.vmem [shape: f32[2,1,1], index: 2, kind: output, shape index: {}]
  %s3 = sld [smem:[#allocation0]]
  $region65: #{tpu_custom_call.1} parent=0
    _
  %s5 = ssub.s32 1, %s3
  %s6 = scalar_select 0, %s5, %s3
  $region1: #{tpu_custom_call.1} parent=0
    #allocation3 [shape = 'u8[16384]{0}', space=vmem, size = 0x4000, scoped, tag = 'input window, operand 0']
    #allocation4 [shape = 's32[2]{0}', space=sflag, size = 0x8, scoped, tag = 'scoped memory for tpu_custom_call.1']
    #allocation5 [shape = 'u8[16384]{0}', space=vmem, size = 0x4000, scoped, tag = 'input window, operand 1']
    #allocation6 [shape = 's32[2]{0}', space=sflag, size = 0x8, scoped, tag = 'scoped memory for tpu_custom_call.1']
    %7 = vsyncpa [#allocation4], 0
    %s8 = scalar_lea.sflag [#allocation4], 1
    %9 = vsyncpa %s8, 0
    %10 = vsyncpa [#allocation6], 0
    %s11 = scalar_lea.sflag [#allocation6], 1
    %12 = vsyncpa %s11, 0
    loop: start=0, step=1, limit=4
    $region2: #{tpu_custom_call.1} parent=1 // loop_pre_header
      _
    $region3: #{tpu_custom_call.1} parent=1 // loop_header
      %s14 = sphi 0, %s18
      %p15 = scmp.ge.s32.totalorder %s14, 4
      %s21 = sphi 0, %s33
      %s22 = sphi 0, %s29
      %s23 = sphi 0, %s21
      %s24 = sphi 0, %s22
      %s25 = sphi 0, %s23
      %s26 = sphi 0, %s24
      %s42 = sphi 0, %s44
      %s45 = sphi 0, %s42
      %s46 = sphi 0, %s45
      %s62 = sphi 0, %s46
      %s74 = sphi 0, %s76
      %s77 = sphi 0, %s74
      %s78 = sphi 0, %s77
      %s94 = sphi 0, %s78
      %s100 = sphi 0, %s102
      %s103 = sphi 0, %s100
      %s104 = sphi 0, %s103
      %s120 = sphi 0, %s104
    $region4: #{tpu_custom_call.1} parent=1 // loop_header_branch
      %17 = sbr.rel (%p15) target = $region8
    $region5: #{tpu_custom_call.1} parent=1 // loop_body
      %s19 = ssub.s32 %s14, 1
      %s20 = ssub.s32 %s14, 2
      %s27 = sadd.s32 1, %s22
      %p28 = scmp.ge.s32.totalorder %s27, 1
      %s29 = scalar_select %p28, 0, %s27
      %s30 = sadd.s32 1, %s21
      %s31 = scalar_select %p28, %s30, %s21
      %p32 = scmp.ge.s32.totalorder %s31, 2
      %s33 = scalar_select %p32, 0, %s31
      %s34 = sadd.s32 %s21, %s22
      %p35 = scmp.lt.s32.totalorder %s34, 0
      %s36 = scalar_select %p35, %s34, 0
      %s37 = sadd.s32 %s33, %s29
      %p38 = scmp.lt.s32.totalorder %s37, 0
      %s39 = scalar_select %p38, %s37, 0
      %s40 = ssub.s32 %s36, %s39
      %p41 = scmp.eq.s32.totalorder %s40, 0
      %s43 = sadd.s32 %s42, 1
      %s44 = scalar_select %p41, %s42, %s43
      %p47 = pneg %p41
      %p48 = scmp.eq.s32.totalorder %s14, 1
      %p49 = por %p47, %p48
      %p50 = scmp.ne.s32.totalorder %s42, %s45
      %p51 = scmp.eq.s32.totalorder %s14, 0
      %p52 = por %p50, %p51
      %p53 = scmp.ne.s32.totalorder %s42, %s45
      %p54 = scmp.eq.s32.totalorder %s19, 1
      %p55 = por %p53, %p54
      %p56 = scmp.ne.s32.totalorder %s45, %s46
      %p57 = scmp.eq.s32.totalorder %s19, 0
      %p58 = por %p56, %p57
      %p59 = scmp.ne.s32.totalorder %s45, %s46
      %p60 = scmp.eq.s32.totalorder %s20, 1
      %p61 = por %p59, %p60
      %p63 = scmp.ne.s32.totalorder %s46, %s62
      %p64 = scmp.eq.s32.totalorder %s20, 0
      %p65 = por %p63, %p64
      %s66 = sadd.s32 %s21, %s22
      %p67 = scmp.lt.s32.totalorder %s66, 0
      %s68 = scalar_select %p67, %s66, 0
      %s69 = sadd.s32 %s33, %s29
      %p70 = scmp.lt.s32.totalorder %s69, 0
      %s71 = scalar_select %p70, %s69, 0
      %s72 = ssub.s32 %s68, %s71
      %p73 = scmp.eq.s32.totalorder %s72, 0
      %s75 = sadd.s32 %s74, 1
      %s76 = scalar_select %p73, %s74, %s75
      %p79 = pneg %p73
      %p80 = scmp.eq.s32.totalorder %s14, 1
      %p81 = por %p79, %p80
      %p82 = scmp.ne.s32.totalorder %s74, %s77
      %p83 = scmp.eq.s32.totalorder %s14, 0
      %p84 = por %p82, %p83
      %p85 = scmp.ne.s32.totalorder %s74, %s77
      %p86 = scmp.eq.s32.totalorder %s19, 1
      %p87 = por %p85, %p86
      %p88 = scmp.ne.s32.totalorder %s77, %s78
      %p89 = scmp.eq.s32.totalorder %s19, 0
      %p90 = por %p88, %p89
      %p91 = scmp.ne.s32.totalorder %s77, %s78
      %p92 = scmp.eq.s32.totalorder %s20, 1
      %p93 = por %p91, %p92
      %p95 = scmp.ne.s32.totalorder %s78, %s94
      %p96 = scmp.eq.s32.totalorder %s20, 0
      %p97 = por %p95, %p96
      %s98 = ssub.s32 %s21, %s33
      %p99 = scmp.eq.s32.totalorder %s98, 0
      %s101 = sadd.s32 %s100, 1
      %s102 = scalar_select %p99, %s100, %s101
      %p105 = pneg %p99
      %p106 = scmp.eq.s32.totalorder %s14, 1
      %p107 = por %p105, %p106
      %p108 = scmp.ne.s32.totalorder %s100, %s103
      %p109 = scmp.eq.s32.totalorder %s14, 0
      %p110 = por %p108, %p109
      %p111 = scmp.ne.s32.totalorder %s100, %s103
      %p112 = scmp.eq.s32.totalorder %s19, 1
      %p113 = por %p111, %p112
      %p114 = scmp.ne.s32.totalorder %s103, %s104
      %p115 = scmp.eq.s32.totalorder %s19, 0
      %p116 = por %p114, %p115
      %p117 = scmp.ne.s32.totalorder %s103, %s104
      %p118 = scmp.eq.s32.totalorder %s20, 1
      %p119 = por %p117, %p118
      %p121 = scmp.ne.s32.totalorder %s104, %s120
      %p122 = scmp.eq.s32.totalorder %s20, 0
      %p123 = por %p121, %p122
      %p124 = scmp.le.s32.totalorder 1, %s14
      %p125 = scmp.lt.s32.totalorder %s14, 3
      %p126 = pnand %p124, %p125
      %p127 = pneg %p126
      // Predicated region
      $region9: #{tpu_custom_call.1} parent=5 // pred_check
        _
      $region10: #{tpu_custom_call.1} parent=5 // pred_check_branch
        %129 = sbr.rel (%p126) target = $region12
      $region11: #{tpu_custom_call.1} parent=5 // pred_region
        %s130 = ssub.s32 %s14, 1
      $region12: #{tpu_custom_call.1} parent=5 // pred_fallthru
        _
      %p131 = scmp.lt.s32.totalorder %s14, 2
      // Predicated region
      $region13: #{tpu_custom_call.1} parent=5 // pred_check
        %p132 = pneg %p131
      $region14: #{tpu_custom_call.1} parent=5 // pred_check_branch
        %134 = sbr.rel (%p132) target = $region16
      $region15: #{tpu_custom_call.1} parent=5 // pred_region
        // Predicated region
        $region17: #{tpu_custom_call.1} parent=15 // pred_check
          %p135 = pneg %p52
        $region18: #{tpu_custom_call.1} parent=15 // pred_check_branch
          %137 = sbr.rel (%p135) target = $region20
        $region19: #{tpu_custom_call.1} parent=15 // pred_region
          %s138 = sand.u32 %s42, 1
          %s139 = scalar_lea.sflag [#allocation4], %s138
          %s140 = sand.u32 %s42, 1
          %s141 = smul.addr %s140, 16
          %s142 = scalar_lea.vmem [#allocation3], %s141
          %s143 = sadd.s32 %s21, %s22
          %p144 = scmp.lt.s32.totalorder %s143, 0
          %s145 = scalar_select %p144, %s143, 0
          %s147 = ssub.s32 256, 256
          %148 = vsyncadd %s139, %s147
          %s149 = smul.addr %s145, 8
          %s150 = smul.addr %s149, 32
          %s151 = scalar_lea.hbm %s0, %s150
          %s153 = sshll.u32 %s142, 4
          %s154 = int_to_ptr.vmem [resolvable:$true] %s153
          %156 = dma.hbm_to_vmem [thread:$0]  %s151, 256, %s154, %s139
        $region20: #{tpu_custom_call.1} parent=15 // pred_fallthru
          _
        // Predicated region
        $region21: #{tpu_custom_call.1} parent=15 // pred_check
          %p157 = pneg %p84
        $region22: #{tpu_custom_call.1} parent=15 // pred_check_branch
          %159 = sbr.rel (%p157) target = $region24
        $region23: #{tpu_custom_call.1} parent=15 // pred_region
          %s160 = sand.u32 %s74, 1
          %s161 = scalar_lea.sflag [#allocation6], %s160
          %s162 = sand.u32 %s74, 1
          %s163 = smul.addr %s162, 16
          %s164 = scalar_lea.vmem [#allocation5], %s163
          %s165 = sadd.s32 %s21, %s22
          %p166 = scmp.lt.s32.totalorder %s165, 0
          %s167 = scalar_select %p166, %s165, 0
          %s169 = ssub.s32 256, 256
          %170 = vsyncadd %s161, %s169
          %s171 = smul.addr %s167, 8
          %s172 = smul.addr %s171, 32
          %s173 = scalar_lea.hbm %s1, %s172
          %s175 = sshll.u32 %s164, 4
          %s176 = int_to_ptr.vmem [resolvable:$true] %s175
          %178 = dma.hbm_to_vmem [thread:$0]  %s173, 256, %s176, %s161
        $region24: #{tpu_custom_call.1} parent=15 // pred_fallthru
          _
      $region16: #{tpu_custom_call.1} parent=5 // pred_fallthru
        _
      %p179 = scmp.le.s32.totalorder 1, %s14
      %p180 = scmp.lt.s32.totalorder %s14, 3
      %p181 = pnand %p179, %p180
      %p182 = pneg %p181
      // Predicated region
      $region25: #{tpu_custom_call.1} parent=5 // pred_check
        _
      $region26: #{tpu_custom_call.1} parent=5 // pred_check_branch
        %184 = sbr.rel (%p181) target = $region28
      $region27: #{tpu_custom_call.1} parent=5 // pred_region
        %s185 = ssub.s32 %s14, 1
        %s186 = sand.u32 %s45, 1
        %s187 = scalar_lea.sflag [#allocation4], %s186
        %s188 = sand.u32 %s45, 1
        %s189 = smul.addr %s188, 16
        %s190 = scalar_lea.vmem [#allocation3], %s189
        // Predicated region
        $region29: #{tpu_custom_call.1} parent=27 // pred_check
          %p191 = pneg %p58
        $region30: #{tpu_custom_call.1} parent=27 // pred_check_branch
          %193 = sbr.rel (%p191) target = $region32
        $region31: #{tpu_custom_call.1} parent=27 // pred_region
          %194 = dma.done %s187, 256
        $region32: #{tpu_custom_call.1} parent=27 // pred_fallthru
          _
        %s195 = sand.u32 %s77, 1
        %s196 = scalar_lea.sflag [#allocation6], %s195
        %s197 = sand.u32 %s77, 1
        %s198 = smul.addr %s197, 16
        %s199 = scalar_lea.vmem [#allocation5], %s198
        // Predicated region
        $region33: #{tpu_custom_call.1} parent=27 // pred_check
          %p200 = pneg %p90
        $region34: #{tpu_custom_call.1} parent=27 // pred_check_branch
          %202 = sbr.rel (%p200) target = $region36
        $region35: #{tpu_custom_call.1} parent=27 // pred_region
          %203 = dma.done %s196, 256
        $region36: #{tpu_custom_call.1} parent=27 // pred_fallthru
          _
        %s204 = sand.u32 %s45, 1
        %s205 = scalar_lea.sflag [#allocation4], %s204
        %s206 = sand.u32 %s45, 1
        %s207 = smul.addr %s206, 16
        %s208 = scalar_lea.vmem [#allocation3], %s207
        %p209 = pneg %p58
        %p210 = pneg %p55
        %s211 = sand.u32 %s77, 1
        %s212 = scalar_lea.sflag [#allocation6], %s211
        %s213 = sand.u32 %s77, 1
        %s214 = smul.addr %s213, 16
        %s215 = scalar_lea.vmem [#allocation5], %s214
        %p216 = pneg %p90
        %p217 = pneg %p87
        %p218 = pneg %p116
        %p219 = pneg %p113
        %p220 = scmp.lt.s32.totalorder %s23, 1
        %s221 = scalar_select %p220, %s23, 1
        %s222 = scalar_lea.vmem %s2, %s221
        %s223 = sadd.s32 %s23, %s24
        %p224 = scmp.lt.s32.totalorder %s223, 0
        %s225 = scalar_select %p224, %s223, 0
        %s226 = sadd.s32 %s23, %s24
        %p227 = scmp.lt.s32.totalorder %s226, 0
        %s228 = scalar_select %p227, %s226, 0
        %p229 = scmp.lt.s32.totalorder %s23, 1
        %s230 = scalar_select %p229, %s23, 1
        %s231 = scalar_lea.vmem %s2, %s230
        %s232 = sadd.s32 %s23, %s24
        %s233 = smul.u32 %s232, 2
        %p234 = scmp.eq.s32.totalorder %s24, 0
        // Predicated region
        $region37: #{tpu_custom_call.1} parent=27 // pred_check
          %p235 = pneg %p234
        $region38: #{tpu_custom_call.1} parent=27 // pred_check_branch
          %237 = sbr.rel (%p235) target = $region40
        $region39: #{tpu_custom_call.1} parent=27 // pred_region
          %238 = vst [vmem:[#allocation2] sm:$0xff] 0.0
          %239 = vst [vmem:[#allocation2 + $0x8] sm:$0xff] 0.0
        $region40: #{tpu_custom_call.1} parent=27 // pred_fallthru
          _
        %v240 = vld [vmem:[%s190] sm:$0xff]
        %v241 = vld [vmem:[%s190 + $0x8] sm:$0xff]
        %v242 = vld [vmem:[%s199] sm:$0xff]
        %v243 = vld [vmem:[%s199 + $0x8] sm:$0xff]
        %v244 = vsub.f32 %v240, %v242
        %v245 = vsub.f32 %v241, %v243
        %v246 = vand.u32 2147483647, %v244
        %v247 = vand.u32 2147483647, %v245
        %s248 = sadd.s32 %s233, 2
        %p249 = scmp.le.s32.totalorder %s248, 2
        // Predicated region
        $region41: #{tpu_custom_call.1} parent=27 // pred_check
          %p250 = pneg %p249
        $region42: #{tpu_custom_call.1} parent=27 // pred_check_branch
          %252 = sbr.rel (%p250) target = $region44
        $region43: #{tpu_custom_call.1} parent=27 // pred_region
          %v253 = vld [vmem:[#allocation2] sm:$0xff]
          %v254 = vld [vmem:[#allocation2 + $0x8] sm:$0xff]
          %v255 = vadd.f32 %v253, %v246
          %v256 = vadd.f32 %v254, %v247
          %257 = vst [vmem:[#allocation2] sm:$0xff] %v255
          %258 = vst [vmem:[#allocation2 + $0x8] sm:$0xff] %v256
        $region44: #{tpu_custom_call.1} parent=27 // pred_fallthru
          _
        %p259 = scmp.gt.s32.totalorder %s248, 2
        // Predicated region
        $region45: #{tpu_custom_call.1} parent=27 // pred_check
          %p260 = pneg %p259
        $region46: #{tpu_custom_call.1} parent=27 // pred_check_branch
          %262 = sbr.rel (%p260) target = $region48
        $region47: #{tpu_custom_call.1} parent=27 // pred_region
          %v263 = vlaneseq
          %v264 = vshrl.u32 %v263, 7
          %v265 = vstv %s233
          %v266 = vadd.s32 %v264, %v265
          %vm267 = vcmp.lt.s32.totalorder %v266, 2
          %v268 = vsel %vm267, 1, 0
          %vm269 = vcmp.eq.s32.totalorder %v268, 1
          %v272 = vcombine.high %v246, %v246
          %v274 = vunpack.c.l.s4 1983009808
          %v275 = vunpack.c.0.s8 %v274
          %v276 = vlaneseq
          %v277 = vshrl.u32 %v276, 7
          %v278 = vsub.s32 %v275, %v277
          %v279 = vrot.slane %v246, %v278
          %v281 = vunpack.c.l.s4 1983009808
          %v282 = vunpack.c.0.s8 %v281
          %v283 = vlaneseq
          %v284 = vshrl.u32 %v283, 7
          %v285 = vsub.s32 %v282, %v284
          %v286 = vrot.slane %v272, %v285
          %v287 = vcombine.high %v279, %v279
          %v288 = vcombine.high %v286, %v286
          %v289 = vcombine.high %v247, %v247
          %v291 = vunpack.c.l.s4 1983009808
          %v292 = vunpack.c.0.s8 %v291
          %v293 = vlaneseq
          %v294 = vshrl.u32 %v293, 7
          %v295 = vsub.s32 %v292, %v294
          %v296 = vrot.slane %v247, %v295
          %v298 = vunpack.c.l.s4 1983009808
          %v299 = vunpack.c.0.s8 %v298
          %v300 = vlaneseq
          %v301 = vshrl.u32 %v300, 7
          %v302 = vsub.s32 %v299, %v301
          %v303 = vrot.slane %v289, %v302
          %v304 = vcombine.high %v296, %v296
          %v305 = vcombine.high %v303, %v303
          %v314 = vsel %vm269, %v279, 0.0
          %v315 = vsel %vm269, %v287, 0.0
          %v316 = vsel %vm269, %v286, 0.0
          %v317 = vsel %vm269, %v288, 0.0
          %v318 = vsel %vm269, %v296, 0.0
          %v319 = vsel %vm269, %v304, 0.0
          %v320 = vsel %vm269, %v303, 0.0
          %v321 = vsel %vm269, %v305, 0.0
          %v322 = vld [vmem:[#allocation2] sm:$0xff]
          %v323 = vld [vmem:[#allocation2 + $0x8] sm:$0xff]
          %v332 = vcombine.low %v314, %v315
          %v333 = vcombine.low %v316, %v317
          %v335 = vunpack.c.l.s4 1983009808
          %v336 = vunpack.c.0.s8 %v335
          %v337 = vlaneseq
          %v338 = vshrl.u32 %v337, 7
          %v339 = vsub.s32 %v336, %v338
          %v340 = vrot.slane %v332, %v339
          %v342 = vunpack.c.l.s4 1983009808
          %v343 = vunpack.c.0.s8 %v342
          %v344 = vlaneseq
          %v345 = vshrl.u32 %v344, 7
          %v346 = vsub.s32 %v343, %v345
          %v347 = vrot.slane %v333, %v346
          %v348 = vcombine.low %v340, %v347
          %v349 = vcombine.low %v318, %v319
          %v350 = vcombine.low %v320, %v321
          %v352 = vunpack.c.l.s4 1983009808
          %v353 = vunpack.c.0.s8 %v352
          %v354 = vlaneseq
          %v355 = vshrl.u32 %v354, 7
          %v356 = vsub.s32 %v353, %v355
          %v357 = vrot.slane %v349, %v356
          %v359 = vunpack.c.l.s4 1983009808
          %v360 = vunpack.c.0.s8 %v359
          %v361 = vlaneseq
          %v362 = vshrl.u32 %v361, 7
          %v363 = vsub.s32 %v360, %v362
          %v364 = vrot.slane %v350, %v363
          %v365 = vcombine.low %v357, %v364
          %v368 = vadd.f32 %v322, %v348
          %v369 = vadd.f32 %v323, %v365
          %370 = vst [vmem:[#allocation2] sm:$0xff] %v368
          %371 = vst [vmem:[#allocation2 + $0x8] sm:$0xff] %v369
        $region48: #{tpu_custom_call.1} parent=27 // pred_fallthru
          _
        // Predicated region
        $region49: #{tpu_custom_call.1} parent=27 // pred_check
          %p372 = pneg %p234
        $region50: #{tpu_custom_call.1} parent=27 // pred_check_branch
          %374 = sbr.rel (%p372) target = $region52
        $region51: #{tpu_custom_call.1} parent=27 // pred_region
          %v375 = vld [vmem:[#allocation2] sm:$0xff]
          %v376 = vld [vmem:[#allocation2 + $0x8] sm:$0xff]
          %v379 = vcombine.high %v375, %v375
          %v381 = vunpack.c.l.s4 1983009808
          %v382 = vunpack.c.0.s8 %v381
          %v383 = vlaneseq
          %v384 = vshrl.u32 %v383, 7
          %v385 = vsub.s32 %v382, %v384
          %v386 = vrot.slane %v375, %v385
          %v388 = vunpack.c.l.s4 1983009808
          %v389 = vunpack.c.0.s8 %v388
          %v390 = vlaneseq
          %v391 = vshrl.u32 %v390, 7
          %v392 = vsub.s32 %v389, %v391
          %v393 = vrot.slane %v379, %v392
          %v394 = vcombine.high %v386, %v386
          %v395 = vcombine.high %v393, %v393
          %v396 = vcombine.high %v376, %v376
          %v398 = vunpack.c.l.s4 1983009808
          %v399 = vunpack.c.0.s8 %v398
          %v400 = vlaneseq
          %v401 = vshrl.u32 %v400, 7
          %v402 = vsub.s32 %v399, %v401
          %v403 = vrot.slane %v376, %v402
          %v405 = vunpack.c.l.s4 1983009808
          %v406 = vunpack.c.0.s8 %v405
          %v407 = vlaneseq
          %v408 = vshrl.u32 %v407, 7
          %v409 = vsub.s32 %v406, %v408
          %v410 = vrot.slane %v396, %v409
          %v411 = vcombine.high %v403, %v403
          %v412 = vcombine.high %v410, %v410
          %vm421 = vcmask 1041408
          %v422 = vsel %vm421, %v386, 0.0
          %v423 = vsel %vm421, %v394, 0.0
          %v424 = vadd.f32 %v422, %v423
          %v425 = vsel %vm421, %v393, 0.0
          %v426 = vadd.f32 %v424, %v425
          %v427 = vsel %vm421, %v395, 0.0
          %v428 = vadd.f32 %v426, %v427
          %v429 = vsel %vm421, %v403, 0.0
          %v430 = vadd.f32 %v428, %v429
          %v431 = vsel %vm421, %v411, 0.0
          %v432 = vadd.f32 %v430, %v431
          %v433 = vsel %vm421, %v410, 0.0
          %v434 = vadd.f32 %v432, %v433
          %v435 = vsel %vm421, %v412, 0.0
          %v436 = vadd.f32 %v434, %v435
          %437 = vadd.xlane.f32.xlu0 %v436
          %v438 = vpop.xlane.xlu0 %437
          %v439 = vrot.slane %v438, 4
          %v440 = vadd.f32 %v438, %v439
          %v441 = vrot.slane %v440, 2
          %v442 = vadd.f32 %v440, %v441
          %v443 = vrot.slane %v442, 1
          %v444 = vadd.f32 %v442, %v443
          %s445 = vtos %v444
          %v446 = vstv %s445
          %vm447 = vcmask 0
          %448 = vst.msk [vmem:[%s231] sm:$0x1] %vm447, %v446
        $region52: #{tpu_custom_call.1} parent=27 // pred_fallthru
          _
        %p449 = scmp.lt.s32.totalorder %s23, 1
        %s450 = scalar_select %p449, %s23, 1
        %s451 = scalar_lea.vmem %s2, %s450
        // Predicated region
        $region53: #{tpu_custom_call.1} parent=27 // pred_check
          %p452 = pneg %p113
        $region54: #{tpu_custom_call.1} parent=27 // pred_check_branch
          %454 = sbr.rel (%p452) target = $region56
        $region55: #{tpu_custom_call.1} parent=27 // pred_region
          _
        $region56: #{tpu_custom_call.1} parent=27 // pred_fallthru
          _
      $region28: #{tpu_custom_call.1} parent=5 // pred_fallthru
        _
      %p455 = scmp.le.s32.totalorder 2, %s14
      // Predicated region
      $region57: #{tpu_custom_call.1} parent=5 // pred_check
        %p456 = pneg %p455
      $region58: #{tpu_custom_call.1} parent=5 // pred_check_branch
        %458 = sbr.rel (%p456) target = $region60
      $region59: #{tpu_custom_call.1} parent=5 // pred_region
        %s459 = ssub.s32 %s14, 2
        // Predicated region
        $region61: #{tpu_custom_call.1} parent=59 // pred_check
          %p460 = pneg %p119
        $region62: #{tpu_custom_call.1} parent=59 // pred_check_branch
          %462 = sbr.rel (%p460) target = $region64
        $region63: #{tpu_custom_call.1} parent=59 // pred_region
          %p463 = scmp.lt.s32.totalorder %s25, 1
          %s464 = scalar_select %p463, %s25, 1
          %s465 = scalar_lea.vmem %s2, %s464
        $region64: #{tpu_custom_call.1} parent=59 // pred_fallthru
          _
      $region60: #{tpu_custom_call.1} parent=5 // pred_fallthru
        _
    $region6: #{tpu_custom_call.1} parent=1 // loop_footer
      %s18 = sadd.s32 1, %s14
    $region7: #{tpu_custom_call.1} parent=1 // loop_footer_branch
      %13 = sbr.rel target = $region3
    $region8: #{tpu_custom_call.1} parent=1 // loop_exit
      _
    %466 = vsyncpa [#allocation4], 1
    %s467 = scalar_lea.sflag [#allocation4], 1
    %468 = vsyncpa %s467, 1
    %469 = vsyncpa [#allocation6], 1
    %s470 = scalar_lea.sflag [#allocation6], 1
    %471 = vsyncpa %s470, 1

</llo_original>
